<compile_context>
chip_gen: v6e
topology: v6e:2x2x1
jax: 0.10.0
libtpu: 0.0.40
codegen_flags: <defaults>
</compile_context>

<pallas_src>
import jax
import jax.numpy as jnp
from jax import lax
from jax.experimental import pallas as pl
from jax.experimental.pallas import tpu as pltpu

# ---------------- problem sizes (small, synthetic) ----------------
NUM_EMB = 16           # number of latent codes in the embedding table (LV)
LATENT  = 32           # latent code dimension
N_FILT  = 64           # n_filters (decoder hidden width)
C, H, W = 4, 8, 8      # decoded image shape (NCHW)
OUT_DIM = C * H * W    # 256  (already a multiple of 128 -> lane-dense output)
B       = 8            # batch of indices (matches one sublane group)

LAT_PAD = 128          # LATENT padded to one full lane width
HID_PAD = 128          # N_FILT padded to one full lane width (exactly one MXU pass on v5e)


def combined_kernel(idx_ref, z_ref, w1_ref, b1_ref, w2_ref, b2_ref, out_ref):
    """Embedding gather (one-hot matmul) + 2-layer MLP decoder, all in VMEM/vregs.

    idx_ref : VMEM (B, 1) int32          -- indices into the embedding table
    z_ref   : VMEM (NUM_EMB, LAT_PAD)    -- embedding table, lane-padded
    w1_ref  : VMEM (LAT_PAD, HID_PAD)    -- zero-padded Linear #1 weight
    b1_ref  : VMEM (1, HID_PAD)
    w2_ref  : VMEM (HID_PAD, OUT_DIM)    -- zero rows beyond N_FILT
    b2_ref  : VMEM (1, OUT_DIM)
    out_ref : VMEM (B, OUT_DIM)
    """
    # --- Z(index): vectorized one-hot gather (single small MXU matmul) ---
    idx_col = idx_ref[...]                                            # (B, 1) int32
    onehot = (lax.broadcasted_iota(jnp.int32, (B, NUM_EMB), 1)
              == idx_col).astype(jnp.float32)                         # (B, NUM_EMB)
    code = jnp.dot(onehot, z_ref[...],
                   preferred_element_type=jnp.float32)                # (B, LAT_PAD)

    # --- Decoder(code): Linear -> ReLU -> Linear (lane-dense MXU matmuls) ---
    h = jnp.dot(code, w1_ref[...],
                preferred_element_type=jnp.float32) + b1_ref[...]     # (B, HID_PAD)
    h = jnp.maximum(h, 0.0)
    out_ref[...] = jnp.dot(h, w2_ref[...],
                           preferred_element_type=jnp.float32) + b2_ref[...]


def combined_nets_forward(index, z_table, w1, b1, w2, b2):
    """index: (B,) int32. Returns decoded images (B, C, H, W) in NCHW."""
    # ---- lane-pad the narrow operands with zeros (numerics unchanged) ----
    z_pad  = jnp.zeros((NUM_EMB, LAT_PAD), jnp.float32).at[:, :LATENT].set(z_table)
    w1_pad = jnp.zeros((LAT_PAD, HID_PAD), jnp.float32).at[:LATENT, :N_FILT].set(w1)
    b1_pad = jnp.zeros((1, HID_PAD), jnp.float32).at[:, :N_FILT].set(b1)
    w2_pad = jnp.zeros((HID_PAD, OUT_DIM), jnp.float32).at[:N_FILT, :].set(w2)
    idx_col = index.astype(jnp.int32).reshape(B, 1)

    flat = pl.pallas_call(
        combined_kernel,
        out_shape=jax.ShapeDtypeStruct((B, OUT_DIM), jnp.float32),
        in_specs=[
            pl.BlockSpec(memory_space=pltpu.MemorySpace.VMEM),   # indices (B,1) int32
            pl.BlockSpec(memory_space=pltpu.MemorySpace.VMEM),   # embedding table
            pl.BlockSpec(memory_space=pltpu.MemorySpace.VMEM),   # W1 (padded)
            pl.BlockSpec(memory_space=pltpu.MemorySpace.VMEM),   # b1 (padded)
            pl.BlockSpec(memory_space=pltpu.MemorySpace.VMEM),   # W2 (padded)
            pl.BlockSpec(memory_space=pltpu.MemorySpace.VMEM),   # b2
        ],
        out_specs=pl.BlockSpec(memory_space=pltpu.MemorySpace.VMEM),
    )(idx_col, z_pad, w1_pad, b1_pad, w2_pad, b2)
    # glue: flat (B, C*H*W) -> NCHW
    return flat.reshape(B, C, H, W)


def reference_forward(index, z_table, w1, b1, w2, b2):
    code = jnp.take(z_table, index, axis=0)
    h = jnp.maximum(code @ w1 + b1, 0.0)
    return (h @ w2 + b2).reshape(B, C, H, W)


if __name__ == "__main__":
    key = jax.random.PRNGKey(0)
    k_z, k_w1, k_b1, k_w2, k_b2, k_idx = jax.random.split(key, 6)

    # deterministic synthetic parameters (shapes implied by LV / Decoder above)
    z_table = jax.random.normal(k_z,  (NUM_EMB, LATENT), dtype=jnp.float32)
    w1      = jax.random.normal(k_w1, (LATENT, N_FILT),  dtype=jnp.float32) * 0.1
    b1      = jax.random.normal(k_b1, (1, N_FILT),       dtype=jnp.float32) * 0.1
    w2      = jax.random.normal(k_w2, (N_FILT, OUT_DIM), dtype=jnp.float32) * 0.1
    b2      = jax.random.normal(k_b2, (1, OUT_DIM),      dtype=jnp.float32) * 0.1

    index = jax.random.randint(k_idx, (B,), 0, NUM_EMB, dtype=jnp.int32)

    out = combined_nets_forward(index, z_table, w1, b1, w2, b2)
    out = jax.block_until_ready(out)

    ref = reference_forward(index, z_table, w1, b1, w2, b2)
    assert out.shape == (B, C, H, W)
    assert jnp.allclose(out, ref, atol=1e-4, rtol=1e-4)

    print("KERNEL_OK")
</pallas_src>

<mosaic_0001>
module attributes {stable_mosaic.version = 11 : i64} {
  func.func @combined_kernel(%arg0: memref<8x1xi32, #tpu.memory_space<vmem>>, %arg1: memref<16x128xf32, #tpu.memory_space<vmem>>, %arg2: memref<128x128xf32, #tpu.memory_space<vmem>>, %arg3: memref<1x128xf32, #tpu.memory_space<vmem>>, %arg4: memref<128x256xf32, #tpu.memory_space<vmem>>, %arg5: memref<1x256xf32, #tpu.memory_space<vmem>>, %arg6: memref<8x256xf32, #tpu.memory_space<vmem>>) attributes {dimension_semantics = [], scalar_prefetch = 0 : i64, scratch_operands = 0 : i64, tpu.core_type = #tpu.core_type<tc>} {
    %c0 = arith.constant 0 : index
    %c0_0 = arith.constant 0 : index
    %0 = vector.load %arg0[%c0, %c0_0] : memref<8x1xi32, #tpu.memory_space<vmem>>, vector<8x1xi32>
    %1 = tpu.iota {dimensions = array<i32: 1>} : vector<8x16xi32>
    %2 = vector.broadcast %0 : vector<8x1xi32> to vector<8x16xi32>
    %3 = arith.cmpi eq, %1, %2 : vector<8x16xi32>
    %4 = arith.extui %3 : vector<8x16xi1> to vector<8x16xi32>
    %5 = arith.sitofp %4 : vector<8x16xi32> to vector<8x16xf32>
    %c0_1 = arith.constant 0 : index
    %c0_2 = arith.constant 0 : index
    %6 = vector.load %arg1[%c0_1, %c0_2] : memref<16x128xf32, #tpu.memory_space<vmem>>, vector<16x128xf32>
    %cst = arith.constant dense<0.000000e+00> : vector<8x128xf32>
    %7 = tpu.matmul %5, %6, %cst {dimension_numbers = #tpu.dot_dimension_numbers<[1], [0], [0], [1], [0, 0, 1, 1], [], []>} : vector<8x16xf32>, vector<16x128xf32>, vector<8x128xf32> -> vector<8x128xf32>
    %c0_3 = arith.constant 0 : index
    %c0_4 = arith.constant 0 : index
    %8 = vector.load %arg2[%c0_3, %c0_4] : memref<128x128xf32, #tpu.memory_space<vmem>>, vector<128x128xf32>
    %cst_5 = arith.constant dense<0.000000e+00> : vector<8x128xf32>
    %9 = tpu.matmul %7, %8, %cst_5 {dimension_numbers = #tpu.dot_dimension_numbers<[1], [0], [0], [1], [0, 0, 1, 1], [], []>} : vector<8x128xf32>, vector<128x128xf32>, vector<8x128xf32> -> vector<8x128xf32>
    %c0_6 = arith.constant 0 : index
    %c0_7 = arith.constant 0 : index
    %10 = vector.load %arg3[%c0_6, %c0_7] : memref<1x128xf32, #tpu.memory_space<vmem>>, vector<1x128xf32>
    %11 = vector.broadcast %10 : vector<1x128xf32> to vector<8x128xf32>
    %12 = arith.addf %9, %11 : vector<8x128xf32>
    %cst_8 = arith.constant 0.000000e+00 : f32
    %13 = vector.broadcast %cst_8 : f32 to vector<8x128xf32>
    %14 = arith.maximumf %12, %13 : vector<8x128xf32>
    %c0_9 = arith.constant 0 : index
    %c0_10 = arith.constant 0 : index
    %15 = vector.load %arg4[%c0_9, %c0_10] : memref<128x256xf32, #tpu.memory_space<vmem>>, vector<128x256xf32>
    %cst_11 = arith.constant dense<0.000000e+00> : vector<8x256xf32>
    %16 = tpu.matmul %14, %15, %cst_11 {dimension_numbers = #tpu.dot_dimension_numbers<[1], [0], [0], [1], [0, 0, 1, 1], [], []>} : vector<8x128xf32>, vector<128x256xf32>, vector<8x256xf32> -> vector<8x256xf32>
    %c0_12 = arith.constant 0 : index
    %c0_13 = arith.constant 0 : index
    %17 = vector.load %arg5[%c0_12, %c0_13] : memref<1x256xf32, #tpu.memory_space<vmem>>, vector<1x256xf32>
    %18 = vector.broadcast %17 : vector<1x256xf32> to vector<8x256xf32>
    %19 = arith.addf %16, %18 : vector<8x256xf32>
    %c0_14 = arith.constant 0 : index
    %c0_15 = arith.constant 0 : index
    %20 = vector.load %arg6[%c0_14, %c0_15] : memref<8x256xf32, #tpu.memory_space<vmem>>, vector<8x256xf32>
    tpu.vector_store %arg6[%c0_14, %c0_15], %19 {strides = array<i32>} : memref<8x256xf32, #tpu.memory_space<vmem>>, vector<8x256xf32>,
    return
  }
}

</mosaic_0001>

<llo_original>
// kernel: tpu_custom_call.1
$region0: #{tpu_custom_call.1}
  #allocation0 [shape = 'u32[]', space=smem, size = 0x4, offset = 0x4, fixed_abs, tag = 'smem constant byte address 0x4 - core index']
  #allocation1 [shape = 'u32[144,128]{1,0:T(1,128)}', space=vmem, size = 0x12000, scoped, tag = 'internal scratch']
  %s0 = inlined_call_operand.vmem [shape: s32[8,1], index: 0, kind: input, shape index: {}]
  %s1 = inlined_call_operand.hbm [shape: f32[16,128], index: 1, kind: input, shape index: {}]
  %s2 = inlined_call_operand.hbm [shape: f32[128,128], index: 2, kind: input, shape index: {}]
  %s3 = inlined_call_operand.vmem [shape: f32[1,128], index: 3, kind: input, shape index: {}]
  %s4 = inlined_call_operand.hbm [shape: f32[128,256], index: 4, kind: input, shape index: {}]
  %s5 = inlined_call_operand.vmem [shape: f32[1,256], index: 5, kind: input, shape index: {}]
  %s6 = inlined_call_operand.hbm [shape: f32[8,256], index: 6, kind: output, shape index: {}]
  %s7 = sld [smem:[#allocation0]]
  $region46: #{tpu_custom_call.1} parent=0
    _
  %s9 = ssub.s32 1, %s7
  %s10 = scalar_select 0, %s9, %s7
  $region1: #{tpu_custom_call.1} parent=0
    #allocation2 [shape = 'u8[8192]{0}', space=vmem, size = 0x2000, scoped, tag = 'input window, operand 1, single buffered']
    #allocation3 [shape = 's32[1]{0}', space=sflag, size = 0x4, scoped, tag = 'scoped memory for tpu_custom_call.1']
    #allocation4 [shape = 's32[1]{0}', space=sflag, size = 0x4, scoped, tag = 'scoped memory for tpu_custom_call.1']
    #allocation5 [shape = 'u8[65536]{0}', space=vmem, size = 0x10000, scoped, tag = 'input window, operand 2, single buffered']
    #allocation6 [shape = 's32[1]{0}', space=sflag, size = 0x4, scoped, tag = 'scoped memory for tpu_custom_call.1']
    #allocation7 [shape = 'u8[131072]{0}', space=vmem, size = 0x20000, scoped, tag = 'input window, operand 4, single buffered']
    #allocation8 [shape = 'u8[8192]{0}', space=vmem, size = 0x2000, scoped, tag = 'output window, operand 0, single buffered']
    %11 = vsyncpa [#allocation3], 0
    %12 = vsyncpa [#allocation6], 0
    %13 = vsyncpa [#allocation4], 0
    // Predicated region
    $region2: #{tpu_custom_call.1} parent=1 // pred_check
      _
    $region3: #{tpu_custom_call.1} parent=1 // pred_check_branch
      %15 = sbr.rel (0) target = $region5
    $region4: #{tpu_custom_call.1} parent=1 // pred_region
      _
    $region5: #{tpu_custom_call.1} parent=1 // pred_fallthru
      _
    // Predicated region
    $region6: #{tpu_custom_call.1} parent=1 // pred_check
      _
    $region7: #{tpu_custom_call.1} parent=1 // pred_check_branch
      %17 = sbr.rel (0) target = $region9
    $region8: #{tpu_custom_call.1} parent=1 // pred_region
      %s19 = ssub.s32 256, 256
      %20 = vsyncadd [#allocation3], %s19
      %s21 = sshll.u32 [#allocation2], 4
      %s22 = int_to_ptr.vmem [resolvable:$true] %s21
      %27 = dma.hbm_to_vmem [thread:$0]  %s1, 256, %s22, [#allocation3], 128, 128, 8
    $region9: #{tpu_custom_call.1} parent=1 // pred_fallthru
      _
    // Predicated region
    $region10: #{tpu_custom_call.1} parent=1 // pred_check
      _
    $region11: #{tpu_custom_call.1} parent=1 // pred_check_branch
      %29 = sbr.rel (0) target = $region13
    $region12: #{tpu_custom_call.1} parent=1 // pred_region
      %s31 = ssub.s32 2048, 2048
      %32 = vsyncadd [#allocation6], %s31
      %s33 = sshll.u32 [#allocation5], 4
      %s34 = int_to_ptr.vmem [resolvable:$true] %s33
      %39 = dma.hbm_to_vmem [thread:$0]  %s2, 2048, %s34, [#allocation6], 128, 128, 8
    $region13: #{tpu_custom_call.1} parent=1 // pred_fallthru
      _
    // Predicated region
    $region14: #{tpu_custom_call.1} parent=1 // pred_check
      _
    $region15: #{tpu_custom_call.1} parent=1 // pred_check_branch
      %41 = sbr.rel (0) target = $region17
    $region16: #{tpu_custom_call.1} parent=1 // pred_region
      _
    $region17: #{tpu_custom_call.1} parent=1 // pred_fallthru
      _
    // Predicated region
    $region18: #{tpu_custom_call.1} parent=1 // pred_check
      _
    $region19: #{tpu_custom_call.1} parent=1 // pred_check_branch
      %43 = sbr.rel (0) target = $region21
    $region20: #{tpu_custom_call.1} parent=1 // pred_region
      %s45 = ssub.s32 4096, 4096
      %46 = vsyncadd [#allocation6], %s45
      %s47 = sshll.u32 [#allocation7], 4
      %s48 = int_to_ptr.vmem [resolvable:$true] %s47
      %53 = dma.hbm_to_vmem [thread:$0]  %s4, 4096, %s48, [#allocation6], 256, 256, 16
    $region21: #{tpu_custom_call.1} parent=1 // pred_fallthru
      _
    // Predicated region
    $region22: #{tpu_custom_call.1} parent=1 // pred_check
      _
    $region23: #{tpu_custom_call.1} parent=1 // pred_check_branch
      %55 = sbr.rel (0) target = $region25
    $region24: #{tpu_custom_call.1} parent=1 // pred_region
      _
    $region25: #{tpu_custom_call.1} parent=1 // pred_fallthru
      _
    // Predicated region
    $region26: #{tpu_custom_call.1} parent=1 // pred_check
      _
    $region27: #{tpu_custom_call.1} parent=1 // pred_check_branch
      %57 = sbr.rel (0) target = $region29
    $region28: #{tpu_custom_call.1} parent=1 // pred_region
      %58 = dma.done [#allocation3], 256
    $region29: #{tpu_custom_call.1} parent=1 // pred_fallthru
      _
    // Predicated region
    $region30: #{tpu_custom_call.1} parent=1 // pred_check
      _
    $region31: #{tpu_custom_call.1} parent=1 // pred_check_branch
      %60 = sbr.rel (0) target = $region33
    $region32: #{tpu_custom_call.1} parent=1 // pred_region
      %61 = dma.done [#allocation6], 2048
    $region33: #{tpu_custom_call.1} parent=1 // pred_fallthru
      _
    // Predicated region
    $region34: #{tpu_custom_call.1} parent=1 // pred_check
      _
    $region35: #{tpu_custom_call.1} parent=1 // pred_check_branch
      %63 = sbr.rel (0) target = $region37
    $region36: #{tpu_custom_call.1} parent=1 // pred_region
      %64 = dma.done [#allocation6], 4096
    $region37: #{tpu_custom_call.1} parent=1 // pred_fallthru
      _
    %v65 = vld [vmem:[%s0] sm:$0xff]
    %v66 = vlaneseq
    %v67 = vand.u32 %v66, 127
    %68 = vset.pattern.permute.xlu0 0
    %69 = vperm.xlu0 %68, %v65
    %v70 = vpop.permute.xlu0 %69
    %vm71 = vcmp.eq.s32.totalorder %v67, %v70
    %v72 = vsel %vm71, 1, 0
    %v73 = vcvt.s32.f32 %v72
    %v74 = vld [vmem:[#allocation2] sm:$0xff]
    %v75 = vld [vmem:[#allocation2 + $0x8] sm:$0xff]
    %vm76 = vcmask 130048
    %v78 = vsel %vm76, %v73, 0
    %80 = vmatprep.subr.mxu0 0.0
    %81 = vmatpush1.msra.mxu0 0.0
    %82 = vmatprep.subr.mxu0 0.0
    %83 = vmatpush1.msra.mxu0 0.0
    %84 = vmatprep.subr.mxu0 0.0
    %85 = vmatpush1.msra.mxu0 0.0
    %86 = vmatprep.subr.mxu0 0.0
    %87 = vmatpush1.msra.mxu0 0.0
    %88 = vmatprep.subr.mxu0 0.0
    %89 = vmatpush1.msra.mxu0 0.0
    %90 = vmatprep.subr.mxu0 0.0
    %91 = vmatpush1.msra.mxu0 0.0
    %92 = vmatprep.subr.mxu0 0.0
    %93 = vmatpush1.msra.mxu0 0.0
    %94 = vmatprep.subr.mxu0 0.0
    %95 = vmatpush1.msra.mxu0 0.0
    %96 = vmatprep.subr.mxu0 0.0
    %97 = vmatpush1.msra.mxu0 0.0
    %98 = vmatprep.subr.mxu0 0.0
    %99 = vmatpush1.msra.mxu0 0.0
    %100 = vmatprep.subr.mxu0 0.0
    %101 = vmatpush1.msra.mxu0 0.0
    %102 = vmatprep.subr.mxu0 0.0
    %103 = vmatpush1.msra.mxu0 0.0
    %104 = vmatprep.subr.mxu0 0.0
    %105 = vmatpush1.msra.mxu0 0.0
    %106 = vmatprep.subr.mxu0 0.0
    %107 = vmatpush1.msra.mxu0 0.0
    %108 = vmatprep.subr.mxu0 0.0
    %109 = vmatpush1.msra.mxu0 %v75
    %110 = vmatprep.subr.mxu0 0.0
    %111 = vmatpush1.msra.mxu0 %v74
    %112 = vmatprep.subr.mxu0 0.0
    %113 = vmatpush2.msra.mxu0 0.0
    %114 = vmatprep.subr.mxu0 0.0
    %115 = vmatpush2.msra.mxu0 0.0
    %116 = vmatprep.subr.mxu0 0.0
    %117 = vmatpush2.msra.mxu0 0.0
    %118 = vmatprep.subr.mxu0 0.0
    %119 = vmatpush2.msra.mxu0 0.0
    %120 = vmatprep.subr.mxu0 0.0
    %121 = vmatpush2.msra.mxu0 0.0
    %122 = vmatprep.subr.mxu0 0.0
    %123 = vmatpush2.msra.mxu0 0.0
    %124 = vmatprep.subr.mxu0 0.0
    %125 = vmatpush2.msra.mxu0 0.0
    %126 = vmatprep.subr.mxu0 0.0
    %127 = vmatpush2.msra.mxu0 0.0
    %128 = vmatprep.subr.mxu0 0.0
    %129 = vmatpush2.msra.mxu0 0.0
    %130 = vmatprep.subr.mxu0 0.0
    %131 = vmatpush2.msra.mxu0 0.0
    %132 = vmatprep.subr.mxu0 0.0
    %133 = vmatpush2.msra.mxu0 0.0
    %134 = vmatprep.subr.mxu0 0.0
    %135 = vmatpush2.msra.mxu0 0.0
    %136 = vmatprep.subr.mxu0 0.0
    %137 = vmatpush2.msra.mxu0 0.0
    %138 = vmatprep.subr.mxu0 0.0
    %139 = vmatpush2.msra.mxu0 0.0
    %140 = vmatprep.subr.mxu0 0.0
    %141 = vmatpush2.msra.mxu0 0.0
    %142 = vmatprep.subr.mxu0 0.0
    %143 = vmatpush2.msra.mxu0 0.0
    %144 = vmatprep.mubr.f32.mxu0 0.0
    %145 = vmatmul.mubr.f32.gmra.mxu0 %v78
    %v146 = vpop.f32.mrf.mxu0
    %v147 = vadd.f32 0.0, %v146
    %v148 = vpop.f32.mrf.mxu0
    %149 = vdwg.mxu0
    %v150 = vld [vmem:[#allocation5] sm:$0xff]
    %v151 = vld [vmem:[#allocation5 + $0x8] sm:$0xff]
    %v152 = vld [vmem:[#allocation5 + $0x10] sm:$0xff]
    %v153 = vld [vmem:[#allocation5 + $0x18] sm:$0xff]
    %v154 = vld [vmem:[#allocation5 + $0x20] sm:$0xff]
    %v155 = vld [vmem:[#allocation5 + $0x28] sm:$0xff]
    %v156 = vld [vmem:[#allocation5 + $0x30] sm:$0xff]
    %v157 = vld [vmem:[#allocation5 + $0x38] sm:$0xff]
    %v158 = vld [vmem:[#allocation5 + $0x40] sm:$0xff]
    %v159 = vld [vmem:[#allocation5 + $0x48] sm:$0xff]
    %v160 = vld [vmem:[#allocation5 + $0x50] sm:$0xff]
    %v161 = vld [vmem:[#allocation5 + $0x58] sm:$0xff]
    %v162 = vld [vmem:[#allocation5 + $0x60] sm:$0xff]
    %v163 = vld [vmem:[#allocation5 + $0x68] sm:$0xff]
    %v164 = vld [vmem:[#allocation5 + $0x70] sm:$0xff]
    %v165 = vld [vmem:[#allocation5 + $0x78] sm:$0xff]
    %v166 = vld [vmem:[%s3] sm:$0x1]
    %v168 = vlaneseq
    %v169 = vshrl.u32 %v168, 7
    %v170 = vsub.s32 0, %v169
    %v171 = vrot.slane %v166, %v170
    %173 = vmatprep.subr.mxu0 0.0
    %174 = vmatpush1.msra.mxu0 %v165
    %175 = vmatprep.subr.mxu0 0.0
    %176 = vmatpush1.msra.mxu0 %v164
    %177 = vmatprep.subr.mxu0 0.0
    %178 = vmatpush1.msra.mxu0 %v163
    %179 = vmatprep.subr.mxu0 0.0
    %180 = vmatpush1.msra.mxu0 %v162
    %181 = vmatprep.subr.mxu0 0.0
    %182 = vmatpush1.msra.mxu0 %v161
    %183 = vmatprep.subr.mxu0 0.0
    %184 = vmatpush1.msra.mxu0 %v160
    %185 = vmatprep.subr.mxu0 0.0
    %186 = vmatpush1.msra.mxu0 %v159
    %187 = vmatprep.subr.mxu0 0.0
    %188 = vmatpush1.msra.mxu0 %v158
    %189 = vmatprep.subr.mxu0 0.0
    %190 = vmatpush1.msra.mxu0 %v157
    %191 = vmatprep.subr.mxu0 0.0
    %192 = vmatpush1.msra.mxu0 %v156
    %193 = vmatprep.subr.mxu0 0.0
    %194 = vmatpush1.msra.mxu0 %v155
    %195 = vmatprep.subr.mxu0 0.0
    %196 = vmatpush1.msra.mxu0 %v154
    %197 = vmatprep.subr.mxu0 0.0
    %198 = vmatpush1.msra.mxu0 %v153
    %199 = vmatprep.subr.mxu0 0.0
    %200 = vmatpush1.msra.mxu0 %v152
    %201 = vmatprep.subr.mxu0 0.0
    %202 = vmatpush1.msra.mxu0 %v151
    %203 = vmatprep.subr.mxu0 0.0
    %204 = vmatpush1.msra.mxu0 %v150
    %205 = vmatprep.subr.mxu0 0.0
    %206 = vmatpush2.msra.mxu0 0.0
    %207 = vmatprep.subr.mxu0 0.0
    %208 = vmatpush2.msra.mxu0 0.0
    %209 = vmatprep.subr.mxu0 0.0
    %210 = vmatpush2.msra.mxu0 0.0
    %211 = vmatprep.subr.mxu0 0.0
    %212 = vmatpush2.msra.mxu0 0.0
    %213 = vmatprep.subr.mxu0 0.0
    %214 = vmatpush2.msra.mxu0 0.0
    %215 = vmatprep.subr.mxu0 0.0
    %216 = vmatpush2.msra.mxu0 0.0
    %217 = vmatprep.subr.mxu0 0.0
    %218 = vmatpush2.msra.mxu0 0.0
    %219 = vmatprep.subr.mxu0 0.0
    %220 = vmatpush2.msra.mxu0 0.0
    %221 = vmatprep.subr.mxu0 0.0
    %222 = vmatpush2.msra.mxu0 0.0
    %223 = vmatprep.subr.mxu0 0.0
    %224 = vmatpush2.msra.mxu0 0.0
    %225 = vmatprep.subr.mxu0 0.0
    %226 = vmatpush2.msra.mxu0 0.0
    %227 = vmatprep.subr.mxu0 0.0
    %228 = vmatpush2.msra.mxu0 0.0
    %229 = vmatprep.subr.mxu0 0.0
    %230 = vmatpush2.msra.mxu0 0.0
    %231 = vmatprep.subr.mxu0 0.0
    %232 = vmatpush2.msra.mxu0 0.0
    %233 = vmatprep.subr.mxu0 0.0
    %234 = vmatpush2.msra.mxu0 0.0
    %235 = vmatprep.subr.mxu0 0.0
    %236 = vmatpush2.msra.mxu0 0.0
    %237 = vmatprep.mubr.f32.mxu0 0.0
    %238 = vmatmul.mubr.f32.gmra.mxu0 %v147
    %v239 = vpop.f32.mrf.mxu0
    %v240 = vadd.f32 %v171, %v239
    %v241 = vpop.f32.mrf.mxu0
    %242 = vdwg.mxu0
    %v243 = vmax.f32 %v240, 0.0
    %v244 = vld [vmem:[#allocation7] sm:$0xff]
    %v245 = vld [vmem:[#allocation7 + $0x8] sm:$0xff]
    %v246 = vld [vmem:[#allocation7 + $0x10] sm:$0xff]
    %v247 = vld [vmem:[#allocation7 + $0x18] sm:$0xff]
    %v248 = vld [vmem:[#allocation7 + $0x20] sm:$0xff]
    %v249 = vld [vmem:[#allocation7 + $0x28] sm:$0xff]
    %v250 = vld [vmem:[#allocation7 + $0x30] sm:$0xff]
    %v251 = vld [vmem:[#allocation7 + $0x38] sm:$0xff]
    %v252 = vld [vmem:[#allocation7 + $0x40] sm:$0xff]
    %v253 = vld [vmem:[#allocation7 + $0x48] sm:$0xff]
    %v254 = vld [vmem:[#allocation7 + $0x50] sm:$0xff]
    %v255 = vld [vmem:[#allocation7 + $0x58] sm:$0xff]
    %v256 = vld [vmem:[#allocation7 + $0x60] sm:$0xff]
    %v257 = vld [vmem:[#allocation7 + $0x68] sm:$0xff]
    %v258 = vld [vmem:[#allocation7 + $0x70] sm:$0xff]
    %v259 = vld [vmem:[#allocation7 + $0x78] sm:$0xff]
    %v260 = vld [vmem:[#allocation7 + $0x80] sm:$0xff]
    %v261 = vld [vmem:[#allocation7 + $0x88] sm:$0xff]
    %v262 = vld [vmem:[#allocation7 + $0x90] sm:$0xff]
    %v263 = vld [vmem:[#allocation7 + $0x98] sm:$0xff]
    %v264 = vld [vmem:[#allocation7 + $0xa0] sm:$0xff]
    %v265 = vld [vmem:[#allocation7 + $0xa8] sm:$0xff]
    %v266 = vld [vmem:[#allocation7 + $0xb0] sm:$0xff]
    %v267 = vld [vmem:[#allocation7 + $0xb8] sm:$0xff]
    %v268 = vld [vmem:[#allocation7 + $0xc0] sm:$0xff]
    %v269 = vld [vmem:[#allocation7 + $0xc8] sm:$0xff]
    %v270 = vld [vmem:[#allocation7 + $0xd0] sm:$0xff]
    %v271 = vld [vmem:[#allocation7 + $0xd8] sm:$0xff]
    %v272 = vld [vmem:[#allocation7 + $0xe0] sm:$0xff]
    %v273 = vld [vmem:[#allocation7 + $0xe8] sm:$0xff]
    %v274 = vld [vmem:[#allocation7 + $0xf0] sm:$0xff]
    %v275 = vld [vmem:[#allocation7 + $0xf8] sm:$0xff]
    %v276 = vld [vmem:[%s5] sm:$0x3]
    %v278 = vlaneseq
    %v279 = vshrl.u32 %v278, 7
    %v280 = vsub.s32 0, %v279
    %v281 = vrot.slane %v276, %v280
    %v282 = vlaneseq
    %v283 = vshrl.u32 %v282, 7
    %v284 = vsub.s32 1, %v283
    %v285 = vrot.slane %v276, %v284
    %288 = vmatprep.subr.mxu0 %v275
    %289 = vmatpush1.msra.mxu0 %v274
    %290 = vmatprep.subr.mxu0 %v273
    %291 = vmatpush1.msra.mxu0 %v272
    %292 = vmatprep.subr.mxu0 %v271
    %293 = vmatpush1.msra.mxu0 %v270
    %294 = vmatprep.subr.mxu0 %v269
    %295 = vmatpush1.msra.mxu0 %v268
    %296 = vmatprep.subr.mxu0 %v267
    %297 = vmatpush1.msra.mxu0 %v266
    %298 = vmatprep.subr.mxu0 %v265
    %299 = vmatpush1.msra.mxu0 %v264
    %300 = vmatprep.subr.mxu0 %v263
    %301 = vmatpush1.msra.mxu0 %v262
    %302 = vmatprep.subr.mxu0 %v261
    %303 = vmatpush1.msra.mxu0 %v260
    %304 = vmatprep.subr.mxu0 %v259
    %305 = vmatpush1.msra.mxu0 %v258
    %306 = vmatprep.subr.mxu0 %v257
    %307 = vmatpush1.msra.mxu0 %v256
    %308 = vmatprep.subr.mxu0 %v255
    %309 = vmatpush1.msra.mxu0 %v254
    %310 = vmatprep.subr.mxu0 %v253
    %311 = vmatpush1.msra.mxu0 %v252
    %312 = vmatprep.subr.mxu0 %v251
    %313 = vmatpush1.msra.mxu0 %v250
    %314 = vmatprep.subr.mxu0 %v249
    %315 = vmatpush1.msra.mxu0 %v248
    %316 = vmatprep.subr.mxu0 %v247
    %317 = vmatpush1.msra.mxu0 %v246
    %318 = vmatprep.subr.mxu0 %v245
    %319 = vmatpush1.msra.mxu0 %v244
    %320 = vmatprep.subr.mxu0 0.0
    %321 = vmatpush2.msra.mxu0 0.0
    %322 = vmatprep.subr.mxu0 0.0
    %323 = vmatpush2.msra.mxu0 0.0
    %324 = vmatprep.subr.mxu0 0.0
    %325 = vmatpush2.msra.mxu0 0.0
    %326 = vmatprep.subr.mxu0 0.0
    %327 = vmatpush2.msra.mxu0 0.0
    %328 = vmatprep.subr.mxu0 0.0
    %329 = vmatpush2.msra.mxu0 0.0
    %330 = vmatprep.subr.mxu0 0.0
    %331 = vmatpush2.msra.mxu0 0.0
    %332 = vmatprep.subr.mxu0 0.0
    %333 = vmatpush2.msra.mxu0 0.0
    %334 = vmatprep.subr.mxu0 0.0
    %335 = vmatpush2.msra.mxu0 0.0
    %336 = vmatprep.subr.mxu0 0.0
    %337 = vmatpush2.msra.mxu0 0.0
    %338 = vmatprep.subr.mxu0 0.0
    %339 = vmatpush2.msra.mxu0 0.0
    %340 = vmatprep.subr.mxu0 0.0
    %341 = vmatpush2.msra.mxu0 0.0
    %342 = vmatprep.subr.mxu0 0.0
    %343 = vmatpush2.msra.mxu0 0.0
    %344 = vmatprep.subr.mxu0 0.0
    %345 = vmatpush2.msra.mxu0 0.0
    %346 = vmatprep.subr.mxu0 0.0
    %347 = vmatpush2.msra.mxu0 0.0
    %348 = vmatprep.subr.mxu0 0.0
    %349 = vmatpush2.msra.mxu0 0.0
    %350 = vmatprep.subr.mxu0 0.0
    %351 = vmatpush2.msra.mxu0 0.0
    %352 = vmatprep.mubr.f32.mxu0 0.0
    %353 = vmatmul.mubr.f32.gmra.mxu0 %v243
    %v354 = vpop.f32.mrf.mxu0
    %v355 = vadd.f32 %v281, %v354
    %v356 = vpop.f32.mrf.mxu0
    %v357 = vadd.f32 %v285, %v356
    %358 = vdwg.mxu0
    %359 = vst [vmem:[#allocation8] sm:$0xff] %v355
    %360 = vst [vmem:[#allocation8 + $0x8] sm:$0xff] %v357
    // Predicated region
    $region38: #{tpu_custom_call.1} parent=1 // pred_check
      _
    $region39: #{tpu_custom_call.1} parent=1 // pred_check_branch
      %362 = sbr.rel (0) target = $region41
    $region40: #{tpu_custom_call.1} parent=1 // pred_region
      %s364 = ssub.s32 256, 256
      %365 = vsyncadd [#allocation4], %s364
      %s367 = sshll.u32 [#allocation8], 4
      %s368 = int_to_ptr.vmem [resolvable:$true] %s367
      %370 = dma.vmem_to_hbm [thread:$0]  %s368, 256, %s6, [#allocation4]
    $region41: #{tpu_custom_call.1} parent=1 // pred_fallthru
      _
    // Predicated region
    $region42: #{tpu_custom_call.1} parent=1 // pred_check
      _
    $region43: #{tpu_custom_call.1} parent=1 // pred_check_branch
      %372 = sbr.rel (0) target = $region45
    $region44: #{tpu_custom_call.1} parent=1 // pred_region
      %373 = dma.done [#allocation4], 256
    $region45: #{tpu_custom_call.1} parent=1 // pred_fallthru
      _
    %374 = vsyncpa [#allocation3], 1
    %375 = vsyncpa [#allocation6], 1
    %376 = vsyncpa [#allocation4], 1

</llo_original>
